<compile_context>
chip_gen: v7x
topology: tpu7x:2x2x1
jax: 0.10.0
libtpu: 0.0.40
codegen_flags: <defaults>
</compile_context>

<pallas_src>
import math

import numpy as np
import jax
import jax.numpy as jnp
from jax.experimental import pallas as pl
from jax.experimental.pallas import tpu as pltpu


# ----------------------------------------------------------------------------
# Parameter construction (mirrors MultiSpectralDCTLayer.get_dct_filter)
# ----------------------------------------------------------------------------
def build_dct_filter(tile_size, mapper):
    """(tile_size, tile_size) buffer; only len(mapper) rows filled."""
    dct = np.zeros((tile_size, tile_size), dtype=np.float32)
    for i, u in enumerate(mapper):
        for t in range(tile_size):
            v = math.cos(math.pi * u * (t + 0.5) / tile_size) / math.sqrt(tile_size)
            if u != 0:
                v *= math.sqrt(2)
            dct[i, t] = v
    return jnp.asarray(dct)


# ----------------------------------------------------------------------------
# Pallas kernel: o[b, c] = sum_l x[b, l, c] * w[l, c]
#   x_ref: (TB, L, C)   w_ref: (L, C)   o_ref: (TB, C)
# L sits on the sublane axis, C on the lane axis -> lane-dense output,
# reduction along sublanes, f32 accumulation.
# ----------------------------------------------------------------------------
def dct_reduce_kernel(x_ref, w_ref, o_ref):
    x = x_ref[...].astype(jnp.float32)          # (TB, L, C)
    w = w_ref[...].astype(jnp.float32)          # (L, C)  broadcasts over TB
    o_ref[...] = jnp.sum(x * w, axis=1).astype(o_ref.dtype)


def _choose_batch_tile(B, C, L, itemsize, budget_bytes=10 * 1024 * 1024):
    """Biggest batch tile whose x buffer stays under budget (double-buffered by
    the pipeline).  Keeps the (TB, C) output block 8-aligned on sublanes."""
    per_row = max(1, L * C * itemsize)
    tb = max(1, budget_bytes // per_row)
    if tb >= B:
        return B
    # TODO(synk): add a C grid axis if a single batch row exceeds the budget.
    tb = max(8, (tb // 8) * 8)
    return min(tb, B)


def multispectral_dct_forward(x, base_weight, fs_weights, channel, n,
                              *, batch_tile=None,
                              vmem_limit_bytes=32 * 1024 * 1024):
    """Forward pass of MultiSpectralDCTLayer.

    x:           (B, C, L)   input
    base_weight: (L, L)      DCT filter buffer (num_freq == L rows used)
    fs_weights:  (L,)        FilterSelector.weights parameter
    """
    B, C, L = x.shape
    assert C == channel and channel >= n, "channel must equal C and be >= n"

    # ---- FilterSelector.forward (plain JAX glue; tiny tensors) ----------------
    weighted = base_weight * fs_weights[:, None]            # (L, L)
    _, top_idx = jax.lax.top_k(fs_weights, n)               # ties: lowest index first
    selected = weighted[top_idx]                            # (n, L)
    chunk_size = channel // n
    # rows [i*chunk : (i+1)*chunk] <- selected[i]; last chunk extends to channel
    row_group = jnp.minimum(jnp.arange(channel) // chunk_size, n - 1)
    weight_filter = selected[row_group]                     # (C, L)

    # ---- Layout plumbing: L on sublanes, C on lanes ---------------------------
    x_t = jnp.transpose(x, (0, 2, 1))                       # (B, L, C)
    w_t = jnp.transpose(weight_filter, (1, 0))              # (L, C)

    out_dtype = jnp.result_type(x.dtype, w_t.dtype)
    itemsize = jnp.dtype(x.dtype).itemsize
    TB = batch_tile if batch_tile is not None else _choose_batch_tile(B, C, L, itemsize)
    grid = (pl.cdiv(B, TB),)

    cost = pl.CostEstimate(
        flops=2 * B * C * L,
        transcendentals=0,
        bytes_accessed=(B * C * L * itemsize
                        + C * L * jnp.dtype(w_t.dtype).itemsize
                        + B * C * jnp.dtype(out_dtype).itemsize),
    )

    out = pl.pallas_call(
        dct_reduce_kernel,
        out_shape=jax.ShapeDtypeStruct((B, C), out_dtype),
        grid=grid,
        in_specs=[
            # x tile: (TB, L, C); last two dims are full extents.
            pl.BlockSpec((TB, L, C), lambda i: (i, 0, 0)),
            # filter: constant index_map -> loaded once, stays VMEM-resident.
            pl.BlockSpec((L, C), lambda i: (0, 0)),
        ],
        out_specs=pl.BlockSpec((TB, C), lambda i: (i, 0)),
        compiler_params=pltpu.CompilerParams(
            dimension_semantics=("parallel",),
            vmem_limit_bytes=vmem_limit_bytes,
        ),
        cost_estimate=cost,
    )(x_t, w_t)
    return out


# ----------------------------------------------------------------------------
# Pure-JAX reference (for correctness check)
# ----------------------------------------------------------------------------
def reference_forward(x, base_weight, fs_weights, channel, n):
    weighted = base_weight * fs_weights[:, None]
    _, top_idx = jax.lax.top_k(fs_weights, n)
    selected = weighted[top_idx]
    chunk_size = channel // n
    row_group = jnp.minimum(jnp.arange(channel) // chunk_size, n - 1)
    weight_filter = selected[row_group]
    return jnp.sum(x.astype(jnp.float32) * weight_filter[None, :, :], axis=2)


if __name__ == "__main__":
    key = jax.random.PRNGKey(0)

    # ---- Test 1: tiny shape, single grid step (TB == B) -----------------------
    B, channel, length, n = 2, 16, 16, 8
    mapper = list(range(length))                           # num_freq == length
    base_weight = build_dct_filter(length, mapper)         # (L, L)
    fs_weights = jnp.ones((length,), dtype=jnp.float32)    # __init__: ones(num_freq)

    k1, k2, key = jax.random.split(key, 3)
    x = jax.random.normal(k1, (B, channel, length), dtype=jnp.float32)

    out = multispectral_dct_forward(x, base_weight, fs_weights, channel, n)
    out = jax.block_until_ready(out)
    ref = reference_forward(x, base_weight, fs_weights, channel, n)
    assert out.shape == (B, channel)
    np.testing.assert_allclose(np.asarray(out), np.asarray(ref), rtol=1e-5, atol=1e-5)

    # ---- Test 2: multi-step grid (batch tiling), channel % n != 0, L = 49 -----
    B2, channel2, length2, n2 = 24, 42, 49, 8
    mapper2 = list(range(length2))
    base_weight2 = build_dct_filter(length2, mapper2)
    fs_weights2 = jax.random.uniform(k2, (length2,), dtype=jnp.float32) + 0.5

    k3, _ = jax.random.split(key)
    x2 = jax.random.normal(k3, (B2, channel2, length2), dtype=jnp.float32)

    out2 = multispectral_dct_forward(x2, base_weight2, fs_weights2, channel2, n2,
                                     batch_tile=8)         # grid = (3,)
    out2 = jax.block_until_ready(out2)
    ref2 = reference_forward(x2, base_weight2, fs_weights2, channel2, n2)
    assert out2.shape == (B2, channel2)
    np.testing.assert_allclose(np.asarray(out2), np.asarray(ref2), rtol=1e-5, atol=1e-5)

    print("KERNEL_OK")
</pallas_src>

<mosaic_0001>
module attributes {stable_mosaic.version = 11 : i64} {
  func.func @dct_reduce_kernel(%arg0: i32, %arg1: memref<2x16x16xf32, #tpu.memory_space<vmem>>, %arg2: memref<16x16xf32, #tpu.memory_space<vmem>>, %arg3: memref<2x16xf32, #tpu.memory_space<vmem>>) attributes {dimension_semantics = [#tpu.dimension_semantics<parallel>], iteration_bounds = array<i64: 1>, scalar_prefetch = 0 : i64, scratch_operands = 0 : i64, tpu.core_type = #tpu.core_type<tc>, window_params = [{transform_indices = @transform_0, window_bounds = array<i64: 2, 16, 16>}, {pipeline_mode = #tpu.pipeline_mode<synchronous>, transform_indices = @transform_1, window_bounds = array<i64: 16, 16>}, {transform_indices = @transform_2, window_bounds = array<i64: 2, 16>}]} {
    %c0 = arith.constant 0 : index
    %c0_0 = arith.constant 0 : index
    %c0_1 = arith.constant 0 : index
    %0 = vector.load %arg1[%c0, %c0_0, %c0_1] : memref<2x16x16xf32, #tpu.memory_space<vmem>>, vector<2x16x16xf32>
    %c0_2 = arith.constant 0 : index
    %c0_3 = arith.constant 0 : index
    %1 = vector.load %arg2[%c0_2, %c0_3] : memref<16x16xf32, #tpu.memory_space<vmem>>, vector<16x16xf32>
    %2 = vector.shape_cast %1 : vector<16x16xf32> to vector<1x16x16xf32>
    %3 = vector.broadcast %2 : vector<1x16x16xf32> to vector<2x16x16xf32>
    %4 = arith.mulf %0, %3 : vector<2x16x16xf32>
    %cst = arith.constant dense<0.000000e+00> : vector<2x16xf32>
    %5 = vector.multi_reduction <add>, %4, %cst [1] : vector<2x16x16xf32> to vector<2x16xf32>
    %c0_4 = arith.constant 0 : index
    %c0_5 = arith.constant 0 : index
    %6 = vector.load %arg3[%c0_4, %c0_5] : memref<2x16xf32, #tpu.memory_space<vmem>>, vector<2x16xf32>
    tpu.vector_store %arg3[%c0_4, %c0_5], %5 {strides = array<i32>} : memref<2x16xf32, #tpu.memory_space<vmem>>, vector<2x16xf32>,
    return
  }
  func.func @transform_0(%arg0: i32) -> (i32, i32, i32) {
    %c0_i32 = arith.constant 0 : i32
    %c0_i32_0 = arith.constant 0 : i32
    %c0_i32_1 = arith.constant 0 : i32
    return %arg0, %c0_i32, %c0_i32_0 : i32, i32, i32
  }
  func.func @transform_1(%arg0: i32) -> (i32, i32) {
    %c0_i32 = arith.constant 0 : i32
    %c0_i32_0 = arith.constant 0 : i32
    %c0_i32_1 = arith.constant 0 : i32
    return %c0_i32, %c0_i32_0 : i32, i32
  }
  func.func @transform_2(%arg0: i32) -> (i32, i32) {
    %c0_i32 = arith.constant 0 : i32
    %c0_i32_0 = arith.constant 0 : i32
    return %arg0, %c0_i32 : i32, i32
  }
}

</mosaic_0001>

<llo_original>
// kernel: tpu_custom_call.1
$region0: #{tpu_custom_call.1}
  #allocation0 [shape = 'u32[]', space=smem, size = 0x4, offset = 0x4, fixed_abs, tag = 'smem constant byte address 0x4 - core index']
  #allocation1 [shape = 'u32[144,128]{1,0:T(1,128)}', space=vmem, size = 0x12000, scoped, tag = 'internal scratch']
  %s0 = inlined_call_operand.hbm [shape: f32[2,16,16], index: 0, kind: input, shape index: {}]
  %s1 = inlined_call_operand.hbm [shape: f32[16,16], index: 1, kind: input, shape index: {}]
  %s2 = inlined_call_operand.hbm [shape: f32[2,16], index: 2, kind: output, shape index: {}]
  %s3 = sld [smem:[#allocation0]]
  $region26: #{tpu_custom_call.1} parent=0
    _
  %s5 = ssub.s32 1, %s3
  %s6 = scalar_select 0, %s5, %s3
  $region1: #{tpu_custom_call.1} parent=0
    #allocation2 [shape = 'u8[16384]{0}', space=vmem, size = 0x4000, scoped, tag = 'input window, operand 0, single buffered']
    #allocation3 [shape = 's32[1]{0}', space=sflag, size = 0x4, scoped, tag = 'scoped memory for tpu_custom_call.1']
    #allocation4 [shape = 's32[1]{0}', space=sflag, size = 0x4, scoped, tag = 'scoped memory for tpu_custom_call.1']
    #allocation5 [shape = 'u8[8192]{0}', space=vmem, size = 0x2000, scoped, tag = 'input window, operand 1, single buffered']
    #allocation6 [shape = 's32[1]{0}', space=sflag, size = 0x4, scoped, tag = 'scoped memory for tpu_custom_call.1']
    #allocation7 [shape = 'u8[1024]{0}', space=vmem, size = 0x400, scoped, tag = 'output window, operand 0, single buffered']
    %7 = vsyncpa [#allocation3], 0
    %8 = vsyncpa [#allocation6], 0
    %9 = vsyncpa [#allocation4], 0
    // Predicated region
    $region2: #{tpu_custom_call.1} parent=1 // pred_check
      _
    $region3: #{tpu_custom_call.1} parent=1 // pred_check_branch
      %11 = sbr.rel (0) target = $region5
    $region4: #{tpu_custom_call.1} parent=1 // pred_region
      %s13 = ssub.s32 512, 512
      %14 = vsyncadd [#allocation3], %s13
      %s15 = sshll.u32 [#allocation2], 4
      %s16 = int_to_ptr.vmem [resolvable:$true] %s15
      %21 = dma.hbm_to_vmem [thread:$0]  %s0, 512, %s16, [#allocation3], 128, 128, 8
    $region5: #{tpu_custom_call.1} parent=1 // pred_fallthru
      _
    // Predicated region
    $region6: #{tpu_custom_call.1} parent=1 // pred_check
      _
    $region7: #{tpu_custom_call.1} parent=1 // pred_check_branch
      %23 = sbr.rel (0) target = $region9
    $region8: #{tpu_custom_call.1} parent=1 // pred_region
      %s25 = ssub.s32 256, 256
      %26 = vsyncadd [#allocation6], %s25
      %s27 = sshll.u32 [#allocation5], 4
      %s28 = int_to_ptr.vmem [resolvable:$true] %s27
      %33 = dma.hbm_to_vmem [thread:$0]  %s1, 256, %s28, [#allocation6], 128, 128, 8
    $region9: #{tpu_custom_call.1} parent=1 // pred_fallthru
      _
    // Predicated region
    $region10: #{tpu_custom_call.1} parent=1 // pred_check
      _
    $region11: #{tpu_custom_call.1} parent=1 // pred_check_branch
      %35 = sbr.rel (0) target = $region13
    $region12: #{tpu_custom_call.1} parent=1 // pred_region
      %36 = dma.done [#allocation3], 512
    $region13: #{tpu_custom_call.1} parent=1 // pred_fallthru
      _
    // Predicated region
    $region14: #{tpu_custom_call.1} parent=1 // pred_check
      _
    $region15: #{tpu_custom_call.1} parent=1 // pred_check_branch
      %38 = sbr.rel (0) target = $region17
    $region16: #{tpu_custom_call.1} parent=1 // pred_region
      %39 = dma.done [#allocation6], 256
    $region17: #{tpu_custom_call.1} parent=1 // pred_fallthru
      _
    %v40 = vld [vmem:[#allocation2] sm:$0xff]
    %v41 = vld [vmem:[#allocation2 + $0x8] sm:$0xff]
    %v42 = vld [vmem:[#allocation2 + $0x10] sm:$0xff]
    %v43 = vld [vmem:[#allocation2 + $0x18] sm:$0xff]
    %v44 = vld [vmem:[#allocation5] sm:$0xff]
    %v45 = vld [vmem:[#allocation5 + $0x8] sm:$0xff]
    %v46 = vmul.f32 %v40, %v44
    %v47 = vmul.f32 %v41, %v45
    %v48 = vmul.f32 %v42, %v44
    %v49 = vmul.f32 %v43, %v45
    %vm50 = vcmask 130048
    %v51 = vsel %vm50, %v46, 0.0
    %v52 = vsel %vm50, %v47, 0.0
    %v53 = vadd.f32 %v51, %v52
    %v54 = vrot.slane %v53, 4
    %v55 = vadd.f32 %v53, %v54
    %v56 = vrot.slane %v55, 2
    %v57 = vadd.f32 %v55, %v56
    %v58 = vrot.slane %v57, 1
    %v59 = vadd.f32 %v57, %v58
    %v60 = vsel %vm50, %v48, 0.0
    %v61 = vsel %vm50, %v49, 0.0
    %v62 = vadd.f32 %v60, %v61
    %v63 = vrot.slane %v62, 4
    %v64 = vadd.f32 %v62, %v63
    %v65 = vrot.slane %v64, 2
    %v66 = vadd.f32 %v64, %v65
    %v67 = vrot.slane %v66, 1
    %v68 = vadd.f32 %v66, %v67
    %vm71 = vcmask 1041409
    %v72 = vsel %vm71, %v68, %v59
    %vm74 = vcmask 123904
    %75 = vst.msk [vmem:[#allocation7] sm:$0x3] %vm74, %v72
    // Predicated region
    $region18: #{tpu_custom_call.1} parent=1 // pred_check
      _
    $region19: #{tpu_custom_call.1} parent=1 // pred_check_branch
      %77 = sbr.rel (0) target = $region21
    $region20: #{tpu_custom_call.1} parent=1 // pred_region
      %s79 = ssub.s32 32, 32
      %80 = vsyncadd [#allocation4], %s79
      %s82 = sshll.u32 [#allocation7], 4
      %s83 = int_to_ptr.vmem [resolvable:$true] %s82
      %85 = dma.vmem_to_hbm [thread:$0]  %s83, 32, %s2, [#allocation4]
    $region21: #{tpu_custom_call.1} parent=1 // pred_fallthru
      _
    // Predicated region
    $region22: #{tpu_custom_call.1} parent=1 // pred_check
      _
    $region23: #{tpu_custom_call.1} parent=1 // pred_check_branch
      %87 = sbr.rel (0) target = $region25
    $region24: #{tpu_custom_call.1} parent=1 // pred_region
      %88 = dma.done [#allocation4], 32
    $region25: #{tpu_custom_call.1} parent=1 // pred_fallthru
      _
    %89 = vsyncpa [#allocation3], 1
    %90 = vsyncpa [#allocation6], 1
    %91 = vsyncpa [#allocation4], 1

</llo_original>
